<compile_context>
chip_gen: v5e
topology: v5e:2x2
jax: 0.10.0
libtpu: 0.0.40
codegen_flags: <defaults>
</compile_context>

<pallas_src>
import functools

import jax
import jax.numpy as jnp
from jax.experimental import pallas as pl
from jax.experimental.pallas import tpu as pltpu


def channel_weight_kernel(x_ref, w1t_ref, w2_ref, o_ref, acc_ref, *,
                          inv_hw, hw, thw, acc_w, need_mask):
    """One grid step = (batch tile, spatial tile).

    x_ref   : (bt, C, THW) x.dtype -- flattened-spatial activation tile
    w1t_ref : (C, Cr)      f32     -- transpose of first 1x1-conv weight
    w2_ref  : (C, Cr)      f32     -- second 1x1-conv weight
    o_ref   : (bt, C, 1)   x.dtype -- per-channel sigmoid weights
    acc_ref : (bt, C, AW)  f32     -- VMEM scratch: lane-wise running sum
    """
    s = pl.program_id(1)

    @pl.when(s == 0)
    def _init():
        acc_ref[...] = jnp.zeros_like(acc_ref)

    # --- hot path: stream the tile once, cast to f32, fold lanes with aligned
    # 128-wide VPU adds (no per-step cross-lane reduce, no 1-lane carry). ---
    x_t = x_ref[...].astype(jnp.float32)                       # (bt, C, THW)
    if need_mask:
        lane = jax.lax.broadcasted_iota(jnp.int32, x_t.shape, 2)
        x_t = jnp.where(lane + s * thw < hw, x_t, 0.0)

    part = x_t[:, :, 0:acc_w]
    for j in range(1, thw // acc_w):
        part = part + x_t[:, :, j * acc_w:(j + 1) * acc_w]
    acc_ref[...] += part

    @pl.when(s == pl.num_programs(1) - 1)
    def _finalize():
        # Single cross-lane reduce + tiny FC head, all in f32.
        pooled = jnp.sum(acc_ref[...], axis=-1, keepdims=True) * inv_hw  # (bt,C,1)

        # fc1 (1x1 conv C -> Cr, no bias): h[b,j] = sum_c W1[j,c] * pooled[b,c]
        h = jnp.sum(w1t_ref[...][None] * pooled, axis=1, keepdims=True)  # (bt,1,Cr)
        h = jnp.maximum(h, 0.0)                                          # ReLU

        # fc2 (1x1 conv Cr -> C, no bias): z[b,c] = sum_j W2[c,j] * h[b,j]
        z = jnp.sum(w2_ref[...][None] * h, axis=2, keepdims=True)        # (bt,C,1)

        o_ref[...] = jax.nn.sigmoid(z).astype(o_ref.dtype)


def _device_tuning():
    """(target block bytes, vmem_limit_bytes or None) per TPU generation."""
    try:
        kind = jax.devices()[0].device_kind.lower()
    except Exception:
        kind = ""
    if "v7" in kind:
        return 12 << 20, 48 << 20      # 64 MiB physical VMEM per TensorCore
    if "v6" in kind:
        return 16 << 20, 64 << 20      # 128 MiB physical VMEM
    if "v5p" in kind or "v4" in kind:
        return 16 << 20, 64 << 20
    if "v5" in kind:                   # v5e ("v5 lite"), default scoped is 16 MiB
        return 8 << 20, 32 << 20
    return 4 << 20, None               # unknown: stay inside default scoped VMEM


def _pick_blocks(b, c, hw, itemsize, target_bytes):
    """Choose (batch_tile, spatial_tile) for the x block (bt, C, THW)."""
    per_lane_bytes = max(1, c * itemsize)
    budget_lanes = max(128, ((target_bytes // per_lane_bytes) // 128) * 128)
    if hw >= 128:
        hw_pad = ((hw + 127) // 128) * 128
        thw = min(hw_pad, budget_lanes)
    else:
        thw = hw                        # full-extent block, < 128 lanes (legal)
    bt = 1
    if thw >= hw:                       # whole spatial extent fits in one tile:
        cap = max(1, int(target_bytes // (per_lane_bytes * thw)))
        if b >= 2:
            cap = min(cap, b // 2)      # keep >= 2 "parallel" steps (megacore)
        cap = max(1, min(cap, b))
        for cand in range(cap, 0, -1):  # largest divisor of b <= cap
            if b % cand == 0:
                bt = cand
                break
    return bt, thw


def channel_weight_forward(x_nchw, w1, w2, *, spatial_tile=None, batch_tile=None,
                           target_block_bytes=None, vmem_limit_bytes=None):
    """x: (B, C, H, W) f32/bf16; w1: (Cr, C); w2: (C, Cr)  ->  (B, C, 1, 1)."""
    b, c, h, w = x_nchw.shape
    hw = h * w
    cr = w1.shape[0]
    assert w1.shape == (cr, c) and w2.shape == (c, cr)
    assert hw > 0 and b > 0

    tuned_target, tuned_vmem = _device_tuning()
    if target_block_bytes is None:
        target_block_bytes = tuned_target
    if vmem_limit_bytes is None:
        vmem_limit_bytes = tuned_vmem

    x_flat = x_nchw.reshape(b, c, hw)
    itemsize = jnp.dtype(x_flat.dtype).itemsize

    bt_auto, thw_auto = _pick_blocks(b, c, hw, itemsize, target_block_bytes)
    if spatial_tile is not None:
        thw = spatial_tile
        bt = batch_tile if batch_tile is not None else 1
    else:
        thw = thw_auto
        bt = batch_tile if batch_tile is not None else bt_auto
    assert b % bt == 0, "batch tile must divide batch"
    if thw >= 128:
        assert thw % 128 == 0, "spatial tile >= 128 must be a multiple of 128"

    n_s = pl.cdiv(hw, thw)
    acc_w = 128 if thw >= 128 else thw
    need_mask = (n_s * thw != hw)

    # Tiny weights: keep all head math in f32 regardless of input dtype.
    w1t = jnp.transpose(w1).astype(jnp.float32)     # (C, Cr): C on sublanes
    w2f = w2.astype(jnp.float32)                    # (C, Cr)

    kernel = functools.partial(
        channel_weight_kernel, inv_hw=1.0 / hw, hw=hw, thw=thw,
        acc_w=acc_w, need_mask=need_mask)

    cost = pl.CostEstimate(
        flops=b * c * hw + 4 * b * c * cr,
        transcendentals=b * c,
        bytes_accessed=b * c * hw * itemsize + 4 * (b * c + 2 * c * cr),
    )

    cp_kwargs = dict(dimension_semantics=("parallel", "arbitrary"))
    if vmem_limit_bytes is not None:
        cp_kwargs["vmem_limit_bytes"] = int(vmem_limit_bytes)

    out = pl.pallas_call(
        kernel,
        out_shape=jax.ShapeDtypeStruct((b, c, 1), x_flat.dtype),
        grid=(b // bt, n_s),
        in_specs=[
            pl.BlockSpec((bt, c, thw), lambda i, s: (i, 0, s)),
            pl.BlockSpec((c, cr), lambda i, s: (0, 0)),
            pl.BlockSpec((c, cr), lambda i, s: (0, 0)),
        ],
        out_specs=pl.BlockSpec((bt, c, 1), lambda i, s: (i, 0, 0)),
        scratch_shapes=[pltpu.VMEM((bt, c, acc_w), jnp.float32)],
        compiler_params=pltpu.CompilerParams(**cp_kwargs),
        cost_estimate=cost,
    )(x_flat, w1t, w2f)

    return out.reshape(b, c, 1, 1)


def channel_weight_reference(x_nchw, w1, w2):
    """Pure-JAX reference mirroring the PyTorch forward (math in f32)."""
    xf = x_nchw.astype(jnp.float32)
    pooled = jnp.mean(xf, axis=(2, 3))                          # (B, C)
    h = jnp.maximum(pooled @ w1.astype(jnp.float32).T, 0.0)     # (B, Cr)
    z = h @ w2.astype(jnp.float32).T                            # (B, C)
    return jax.nn.sigmoid(z)[:, :, None, None].astype(x_nchw.dtype)


if __name__ == "__main__":
    key = jax.random.PRNGKey(0)
    kx, k1, k2 = jax.random.split(key, 3)

    # channel=32 with the module's default reduction=16 -> hidden=2.
    B, C, H, W = 2, 32, 16, 16
    REDUCTION = 16
    CR = C // REDUCTION

    x = jax.random.normal(kx, (B, C, H, W), dtype=jnp.float32)
    w1 = 0.1 * jax.random.normal(k1, (CR, C), dtype=jnp.float32)  # Conv2d(C, Cr, 1).weight squeezed
    w2 = 0.1 * jax.random.normal(k2, (C, CR), dtype=jnp.float32)  # Conv2d(Cr, C, 1).weight squeezed

    # 1) f32, forced 2 spatial tiles: exercises accumulate/finalize path.
    out = jax.block_until_ready(channel_weight_forward(x, w1, w2, spatial_tile=128))
    ref = channel_weight_reference(x, w1, w2)
    assert out.shape == (B, C, 1, 1)
    assert jnp.allclose(out, ref, atol=1e-5, rtol=1e-5), "f32 mismatch vs reference"

    # 2) bf16 input, auto tiling: exercises low-precision stream + f32 accumulate.
    xb = x.astype(jnp.bfloat16)
    out_b = jax.block_until_ready(channel_weight_forward(xb, w1, w2))
    ref_b = channel_weight_reference(xb, w1, w2)
    assert out_b.dtype == jnp.bfloat16
    assert jnp.allclose(out_b.astype(jnp.float32), ref_b.astype(jnp.float32),
                        atol=2e-2, rtol=2e-2), "bf16 mismatch vs reference"

    # 3) ragged HW (12x12=144, not a 128 multiple) + batch-fused small-HW path.
    x3 = jax.random.normal(jax.random.PRNGKey(1), (4, C, 12, 12), dtype=jnp.float32)
    out3 = jax.block_until_ready(channel_weight_forward(x3, w1, w2))
    ref3 = channel_weight_reference(x3, w1, w2)
    assert jnp.allclose(out3, ref3, atol=1e-5, rtol=1e-5), "ragged-HW mismatch vs reference"

    print("KERNEL_OK")
</pallas_src>

<mosaic_0001>
module attributes {stable_mosaic.version = 11 : i64} {
  func.func @channel_weight_kernel(%arg0: i32, %arg1: i32, %arg2: memref<1x32x128xf32, #tpu.memory_space<vmem>>, %arg3: memref<32x2xf32, #tpu.memory_space<vmem>>, %arg4: memref<32x2xf32, #tpu.memory_space<vmem>>, %arg5: memref<1x32x1xf32, #tpu.memory_space<vmem>>, %arg6: memref<1x32x128xf32, #tpu.memory_space<vmem>>) attributes {dimension_semantics = [#tpu.dimension_semantics<parallel>, #tpu.dimension_semantics<arbitrary>], iteration_bounds = array<i64: 2, 2>, scalar_prefetch = 0 : i64, scratch_operands = 1 : i64, tpu.core_type = #tpu.core_type<tc>, window_params = [{transform_indices = @transform_0, window_bounds = array<i64: 1, 32, 128>}, {pipeline_mode = #tpu.pipeline_mode<synchronous>, transform_indices = @transform_1, window_bounds = array<i64: 32, 2>}, {pipeline_mode = #tpu.pipeline_mode<synchronous>, transform_indices = @transform_2, window_bounds = array<i64: 32, 2>}, {transform_indices = @transform_3, window_bounds = array<i64: 1, 32, 1>}]} {
    %c0_i32 = arith.constant 0 : i32
    %0 = arith.cmpi eq, %arg1, %c0_i32 : i32
    %1 = arith.extui %0 : i1 to i32
    %c0_i32_0 = arith.constant 0 : i32
    %2 = arith.cmpi ne, %1, %c0_i32_0 : i32
    scf.if %2 {
      %cst = arith.constant 0.000000e+00 : f32
      %10 = vector.broadcast %cst : f32 to vector<1x32x128xf32>
      %c0_10 = arith.constant 0 : index
      %c0_11 = arith.constant 0 : index
      %c0_12 = arith.constant 0 : index
      %11 = vector.load %arg6[%c0_10, %c0_11, %c0_12] : memref<1x32x128xf32, #tpu.memory_space<vmem>>, vector<1x32x128xf32>
      tpu.vector_store %arg6[%c0_10, %c0_11, %c0_12], %10 {strides = array<i32>} : memref<1x32x128xf32, #tpu.memory_space<vmem>>, vector<1x32x128xf32>,
    } else {
    }
    %c0 = arith.constant 0 : index
    %c0_1 = arith.constant 0 : index
    %c0_2 = arith.constant 0 : index
    %3 = vector.load %arg2[%c0, %c0_1, %c0_2] : memref<1x32x128xf32, #tpu.memory_space<vmem>>, vector<1x32x128xf32>
    %c0_3 = arith.constant 0 : index
    %c0_4 = arith.constant 0 : index
    %c0_5 = arith.constant 0 : index
    %4 = vector.load %arg6[%c0_3, %c0_4, %c0_5] : memref<1x32x128xf32, #tpu.memory_space<vmem>>, vector<1x32x128xf32>
    %5 = arith.addf %4, %3 : vector<1x32x128xf32>
    %c0_6 = arith.constant 0 : index
    %c0_7 = arith.constant 0 : index
    %c0_8 = arith.constant 0 : index
    %6 = vector.load %arg6[%c0_6, %c0_7, %c0_8] : memref<1x32x128xf32, #tpu.memory_space<vmem>>, vector<1x32x128xf32>
    tpu.vector_store %arg6[%c0_6, %c0_7, %c0_8], %5 {strides = array<i32>} : memref<1x32x128xf32, #tpu.memory_space<vmem>>, vector<1x32x128xf32>,
    %c1_i32 = arith.constant 1 : i32
    %7 = arith.cmpi eq, %arg1, %c1_i32 : i32
    %8 = arith.extui %7 : i1 to i32
    %c0_i32_9 = arith.constant 0 : i32
    %9 = arith.cmpi ne, %8, %c0_i32_9 : i32
    scf.if %9 {
      %c0_10 = arith.constant 0 : index
      %c0_11 = arith.constant 0 : index
      %c0_12 = arith.constant 0 : index
      %10 = vector.load %arg6[%c0_10, %c0_11, %c0_12] : memref<1x32x128xf32, #tpu.memory_space<vmem>>, vector<1x32x128xf32>
      %cst = arith.constant dense<0.000000e+00> : vector<1x32xf32>
      %11 = vector.multi_reduction <add>, %10, %cst [2] : vector<1x32x128xf32> to vector<1x32xf32>
      %12 = vector.shape_cast %11 : vector<1x32xf32> to vector<1x32x1xf32>
      %cst_13 = arith.constant 3.906250e-03 : f32
      %13 = vector.broadcast %cst_13 : f32 to vector<1x32x1xf32>
      %14 = arith.mulf %12, %13 : vector<1x32x1xf32>
      %c0_14 = arith.constant 0 : index
      %c0_15 = arith.constant 0 : index
      %15 = vector.load %arg3[%c0_14, %c0_15] : memref<32x2xf32, #tpu.memory_space<vmem>>, vector<32x2xf32>
      %16 = vector.shape_cast %15 : vector<32x2xf32> to vector<1x32x2xf32>
      %17 = vector.broadcast %14 : vector<1x32x1xf32> to vector<1x32x2xf32>
      %18 = arith.mulf %16, %17 : vector<1x32x2xf32>
      %cst_16 = arith.constant dense<0.000000e+00> : vector<1x2xf32>
      %19 = vector.multi_reduction <add>, %18, %cst_16 [1] : vector<1x32x2xf32> to vector<1x2xf32>
      %20 = vector.shape_cast %19 : vector<1x2xf32> to vector<1x1x2xf32>
      %cst_17 = arith.constant 0.000000e+00 : f32
      %21 = vector.broadcast %cst_17 : f32 to vector<1x1x2xf32>
      %22 = arith.maximumf %20, %21 : vector<1x1x2xf32>
      %c0_18 = arith.constant 0 : index
      %c0_19 = arith.constant 0 : index
      %23 = vector.load %arg4[%c0_18, %c0_19] : memref<32x2xf32, #tpu.memory_space<vmem>>, vector<32x2xf32>
      %24 = vector.shape_cast %23 : vector<32x2xf32> to vector<1x32x2xf32>
      %25 = vector.broadcast %22 : vector<1x1x2xf32> to vector<1x32x2xf32>
      %26 = arith.mulf %24, %25 : vector<1x32x2xf32>
      %cst_20 = arith.constant dense<0.000000e+00> : vector<1x32xf32>
      %27 = vector.multi_reduction <add>, %26, %cst_20 [2] : vector<1x32x2xf32> to vector<1x32xf32>
      %28 = vector.shape_cast %27 : vector<1x32xf32> to vector<1x32x1xf32>
      %29 = arith.negf %28 : vector<1x32x1xf32>
      %30 = math.exp %29 : vector<1x32x1xf32>
      %cst_21 = arith.constant 1.000000e+00 : f32
      %31 = vector.broadcast %cst_21 : f32 to vector<1x32x1xf32>
      %32 = arith.addf %31, %30 : vector<1x32x1xf32>
      %33 = arith.divf %31, %32 : vector<1x32x1xf32>
      %c0_22 = arith.constant 0 : index
      %c0_23 = arith.constant 0 : index
      %c0_24 = arith.constant 0 : index
      %34 = vector.load %arg5[%c0_22, %c0_23, %c0_24] : memref<1x32x1xf32, #tpu.memory_space<vmem>>, vector<1x32x1xf32>
      tpu.vector_store %arg5[%c0_22, %c0_23, %c0_24], %33 {strides = array<i32>} : memref<1x32x1xf32, #tpu.memory_space<vmem>>, vector<1x32x1xf32>,
    } else {
    }
    return
  }
  func.func @transform_0(%arg0: i32, %arg1: i32) -> (i32, i32, i32) {
    %c0_i32 = arith.constant 0 : i32
    %c0_i32_0 = arith.constant 0 : i32
    return %arg0, %c0_i32, %arg1 : i32, i32, i32
  }
  func.func @transform_1(%arg0: i32, %arg1: i32) -> (i32, i32) {
    %c0_i32 = arith.constant 0 : i32
    %c0_i32_0 = arith.constant 0 : i32
    %c0_i32_1 = arith.constant 0 : i32
    return %c0_i32, %c0_i32_0 : i32, i32
  }
  func.func @transform_2(%arg0: i32, %arg1: i32) -> (i32, i32) {
    %c0_i32 = arith.constant 0 : i32
    %c0_i32_0 = arith.constant 0 : i32
    %c0_i32_1 = arith.constant 0 : i32
    return %c0_i32, %c0_i32_0 : i32, i32
  }
  func.func @transform_3(%arg0: i32, %arg1: i32) -> (i32, i32, i32) {
    %c0_i32 = arith.constant 0 : i32
    %c0_i32_0 = arith.constant 0 : i32
    %c0_i32_1 = arith.constant 0 : i32
    return %arg0, %c0_i32, %c0_i32_0 : i32, i32, i32
  }
}

</mosaic_0001>

<llo_original>
// kernel: tpu_custom_call.1
$region0: #{tpu_custom_call.1}
  #allocation0 [shape = 'u32[]', space=smem, size = 0x4, offset = 0x4, fixed_abs, tag = 'smem constant byte address 0x4 - core index']
  #allocation1 [shape = 'u32[72,128]{1,0:T(1,128)}', space=vmem, size = 0x9000, scoped, tag = 'internal scratch']
  #allocation2 [shape = 'f32[1,32,128]{2,1,0:T(8,128)}', space=vmem, size = 0x4000, scoped, tag = 'scratch operand']
  %s0 = inlined_call_operand.hbm [shape: f32[2,32,256], index: 0, kind: input, shape index: {}]
  %s1 = inlined_call_operand.vmem [shape: f32[32,2], index: 1, kind: input, shape index: {}]
  %s2 = inlined_call_operand.vmem [shape: f32[32,2], index: 2, kind: input, shape index: {}]
  %s3 = inlined_call_operand.vmem [shape: f32[2,32,1], index: 3, kind: output, shape index: {}]
  %s4 = sld [smem:[#allocation0]]
  $region57: #{tpu_custom_call.1} parent=0
    _
  %s6 = ssub.s32 1, %s4
  %s7 = scalar_select 0, %s6, %s4
  $region1: #{tpu_custom_call.1} parent=0
    #allocation3 [shape = 'u8[32768]{0}', space=vmem, size = 0x8000, scoped, tag = 'input window, operand 0']
    #allocation4 [shape = 's32[2]{0}', space=sflag, size = 0x8, scoped, tag = 'scoped memory for tpu_custom_call.1']
    %8 = vsyncpa [#allocation4], 0
    %s9 = scalar_lea.sflag [#allocation4], 1
    %10 = vsyncpa %s9, 0
    loop: start=0, step=1, limit=6
    $region2: #{tpu_custom_call.1} parent=1 // loop_pre_header
      _
    $region3: #{tpu_custom_call.1} parent=1 // loop_header
      %s12 = sphi 0, %s16
      %p13 = scmp.ge.s32.totalorder %s12, 6
      %s19 = sphi 0, %s31
      %s20 = sphi 0, %s27
      %s21 = sphi 0, %s19
      %s22 = sphi 0, %s20
      %s23 = sphi 0, %s21
      %s24 = sphi 0, %s22
      %s36 = sphi 0, %s38
      %s39 = sphi 0, %s36
      %s40 = sphi 0, %s39
      %s56 = sphi 0, %s40
      %s60 = sphi 0, %s60
      %s62 = sphi 0, %s60
      %s63 = sphi 0, %s62
      %s77 = sphi 0, %s63
      %s81 = sphi 0, %s81
      %s83 = sphi 0, %s81
      %s84 = sphi 0, %s83
      %s98 = sphi 0, %s84
      %s104 = sphi 0, %s106
      %s107 = sphi 0, %s104
      %s108 = sphi 0, %s107
      %s124 = sphi 0, %s108
    $region4: #{tpu_custom_call.1} parent=1 // loop_header_branch
      %15 = sbr.rel (%p13) target = $region8
    $region5: #{tpu_custom_call.1} parent=1 // loop_body
      %s17 = ssub.s32 %s12, 1
      %s18 = ssub.s32 %s12, 2
      %s25 = sadd.s32 1, %s20
      %p26 = scmp.ge.s32.totalorder %s25, 2
      %s27 = scalar_select %p26, 0, %s25
      %s28 = sadd.s32 1, %s19
      %s29 = scalar_select %p26, %s28, %s19
      %p30 = scmp.ge.s32.totalorder %s29, 2
      %s31 = scalar_select %p30, 0, %s29
      %s32 = ssub.s32 %s19, %s31
      %s33 = ssub.s32 %s20, %s27
      %s34 = sor.u32 %s32, %s33
      %p35 = scmp.eq.s32.totalorder %s34, 0
      %s37 = sadd.s32 %s36, 1
      %s38 = scalar_select %p35, %s36, %s37
      %p41 = pneg %p35
      %p42 = scmp.eq.s32.totalorder %s12, 3
      %p43 = por %p41, %p42
      %p44 = scmp.ne.s32.totalorder %s36, %s39
      %p45 = scmp.eq.s32.totalorder %s12, 0
      %p46 = por %p44, %p45
      %p47 = scmp.ne.s32.totalorder %s36, %s39
      %p48 = scmp.eq.s32.totalorder %s17, 3
      %p49 = por %p47, %p48
      %p50 = scmp.ne.s32.totalorder %s39, %s40
      %p51 = scmp.eq.s32.totalorder %s17, 0
      %p52 = por %p50, %p51
      %p53 = scmp.ne.s32.totalorder %s39, %s40
      %p54 = scmp.eq.s32.totalorder %s18, 3
      %p55 = por %p53, %p54
      %p57 = scmp.ne.s32.totalorder %s40, %s56
      %p58 = scmp.eq.s32.totalorder %s18, 0
      %p59 = por %p57, %p58
      %s61 = sadd.s32 %s60, 1
      %p64 = scmp.eq.s32.totalorder %s12, 3
      %p65 = scmp.ne.s32.totalorder %s60, %s62
      %p66 = scmp.eq.s32.totalorder %s12, 0
      %p67 = por %p65, %p66
      %p68 = scmp.ne.s32.totalorder %s60, %s62
      %p69 = scmp.eq.s32.totalorder %s17, 3
      %p70 = por %p68, %p69
      %p71 = scmp.ne.s32.totalorder %s62, %s63
      %p72 = scmp.eq.s32.totalorder %s17, 0
      %p73 = por %p71, %p72
      %p74 = scmp.ne.s32.totalorder %s62, %s63
      %p75 = scmp.eq.s32.totalorder %s18, 3
      %p76 = por %p74, %p75
      %p78 = scmp.ne.s32.totalorder %s63, %s77
      %p79 = scmp.eq.s32.totalorder %s18, 0
      %p80 = por %p78, %p79
      %s82 = sadd.s32 %s81, 1
      %p85 = scmp.eq.s32.totalorder %s12, 3
      %p86 = scmp.ne.s32.totalorder %s81, %s83
      %p87 = scmp.eq.s32.totalorder %s12, 0
      %p88 = por %p86, %p87
      %p89 = scmp.ne.s32.totalorder %s81, %s83
      %p90 = scmp.eq.s32.totalorder %s17, 3
      %p91 = por %p89, %p90
      %p92 = scmp.ne.s32.totalorder %s83, %s84
      %p93 = scmp.eq.s32.totalorder %s17, 0
      %p94 = por %p92, %p93
      %p95 = scmp.ne.s32.totalorder %s83, %s84
      %p96 = scmp.eq.s32.totalorder %s18, 3
      %p97 = por %p95, %p96
      %p99 = scmp.ne.s32.totalorder %s84, %s98
      %p100 = scmp.eq.s32.totalorder %s18, 0
      %p101 = por %p99, %p100
      %s102 = ssub.s32 %s19, %s31
      %p103 = scmp.eq.s32.totalorder %s102, 0
      %s105 = sadd.s32 %s104, 1
      %s106 = scalar_select %p103, %s104, %s105
      %p109 = pneg %p103
      %p110 = scmp.eq.s32.totalorder %s12, 3
      %p111 = por %p109, %p110
      %p112 = scmp.ne.s32.totalorder %s104, %s107
      %p113 = scmp.eq.s32.totalorder %s12, 0
      %p114 = por %p112, %p113
      %p115 = scmp.ne.s32.totalorder %s104, %s107
      %p116 = scmp.eq.s32.totalorder %s17, 3
      %p117 = por %p115, %p116
      %p118 = scmp.ne.s32.totalorder %s107, %s108
      %p119 = scmp.eq.s32.totalorder %s17, 0
      %p120 = por %p118, %p119
      %p121 = scmp.ne.s32.totalorder %s107, %s108
      %p122 = scmp.eq.s32.totalorder %s18, 3
      %p123 = por %p121, %p122
      %p125 = scmp.ne.s32.totalorder %s108, %s124
      %p126 = scmp.eq.s32.totalorder %s18, 0
      %p127 = por %p125, %p126
      %p128 = scmp.le.s32.totalorder 1, %s12
      %p129 = scmp.lt.s32.totalorder %s12, 5
      %p130 = pnand %p128, %p129
      %p131 = pneg %p130
      // Predicated region
      $region9: #{tpu_custom_call.1} parent=5 // pred_check
        _
      $region10: #{tpu_custom_call.1} parent=5 // pred_check_branch
        %133 = sbr.rel (%p130) target = $region12
      $region11: #{tpu_custom_call.1} parent=5 // pred_region
        %s134 = ssub.s32 %s12, 1
        // Predicated region
        $region13: #{tpu_custom_call.1} parent=11 // pred_check
          %p135 = pneg %p73
        $region14: #{tpu_custom_call.1} parent=11 // pred_check_branch
          %137 = sbr.rel (%p135) target = $region16
        $region15: #{tpu_custom_call.1} parent=11 // pred_region
          _
        $region16: #{tpu_custom_call.1} parent=11 // pred_fallthru
          _
        // Predicated region
        $region17: #{tpu_custom_call.1} parent=11 // pred_check
          %p138 = pneg %p94
        $region18: #{tpu_custom_call.1} parent=11 // pred_check_branch
          %140 = sbr.rel (%p138) target = $region20
        $region19: #{tpu_custom_call.1} parent=11 // pred_region
          _
        $region20: #{tpu_custom_call.1} parent=11 // pred_fallthru
          _
      $region12: #{tpu_custom_call.1} parent=5 // pred_fallthru
        _
      %p141 = scmp.lt.s32.totalorder %s12, 4
      // Predicated region
      $region21: #{tpu_custom_call.1} parent=5 // pred_check
        %p142 = pneg %p141
      $region22: #{tpu_custom_call.1} parent=5 // pred_check_branch
        %144 = sbr.rel (%p142) target = $region24
      $region23: #{tpu_custom_call.1} parent=5 // pred_region
        // Predicated region
        $region25: #{tpu_custom_call.1} parent=23 // pred_check
          %p145 = pneg %p46
        $region26: #{tpu_custom_call.1} parent=23 // pred_check_branch
          %147 = sbr.rel (%p145) target = $region28
        $region27: #{tpu_custom_call.1} parent=23 // pred_region
          %s148 = sand.u32 %s36, 1
          %s149 = scalar_lea.sflag [#allocation4], %s148
          %s150 = sand.u32 %s36, 1
          %s151 = smul.addr %s150, 32
          %s152 = scalar_lea.vmem [#allocation3], %s151
          %154 = vsyncadd %s149, 0
          %s155 = smul.addr %s19, 8
          %s156 = sadd.s32 %s20, %s155
          %s157 = smul.addr %s156, 8
          %s158 = scalar_lea.hbm %s0, %s157
          %s159 = sshll.u32 %s158, 4
          %s160 = int_to_ptr.hbm [resolvable:$true] %s159
          %s161 = sshll.u32 %s152, 4
          %s162 = int_to_ptr.vmem [resolvable:$true] %s161
          %167 = dma.hbm_to_vmem [thread:$0]  %s160, 512, %s162, %s149, 256, 128, 8
        $region28: #{tpu_custom_call.1} parent=23 // pred_fallthru
          _
      $region24: #{tpu_custom_call.1} parent=5 // pred_fallthru
        _
      %p168 = scmp.le.s32.totalorder 1, %s12
      %p169 = scmp.lt.s32.totalorder %s12, 5
      %p170 = pnand %p168, %p169
      %p171 = pneg %p170
      // Predicated region
      $region29: #{tpu_custom_call.1} parent=5 // pred_check
        _
      $region30: #{tpu_custom_call.1} parent=5 // pred_check_branch
        %173 = sbr.rel (%p170) target = $region32
      $region31: #{tpu_custom_call.1} parent=5 // pred_region
        %s174 = ssub.s32 %s12, 1
        %s175 = sand.u32 %s39, 1
        %s176 = scalar_lea.sflag [#allocation4], %s175
        %s177 = sand.u32 %s39, 1
        %s178 = smul.addr %s177, 32
        %s179 = scalar_lea.vmem [#allocation3], %s178
        // Predicated region
        $region33: #{tpu_custom_call.1} parent=31 // pred_check
          %p180 = pneg %p52
        $region34: #{tpu_custom_call.1} parent=31 // pred_check_branch
          %182 = sbr.rel (%p180) target = $region36
        $region35: #{tpu_custom_call.1} parent=31 // pred_region
          %184 = dma.done %s176, 512
        $region36: #{tpu_custom_call.1} parent=31 // pred_fallthru
          _
        %s185 = sand.u32 %s39, 1
        %s186 = scalar_lea.sflag [#allocation4], %s185
        %s187 = sand.u32 %s39, 1
        %s188 = smul.addr %s187, 32
        %s189 = scalar_lea.vmem [#allocation3], %s188
        %p190 = pneg %p52
        %p191 = pneg %p49
        %p192 = pneg %p73
        %p193 = pneg %p70
        %p194 = pneg %p94
        %p195 = pneg %p91
        %p196 = pneg %p120
        %p197 = pneg %p117
        %p198 = scmp.lt.s32.totalorder %s21, 1
        %s199 = scalar_select %p198, %s21, 1
        %s200 = smul.addr %s199, 4
        %s201 = smul.addr %s200, 8
        %s202 = scalar_lea.vmem %s3, %s201
        %p203 = scmp.lt.s32.totalorder %s21, 1
        %s204 = scalar_select %p203, %s21, 1
        %s205 = smul.addr %s204, 4
        %s206 = smul.addr %s205, 8
        %s207 = scalar_lea.vmem %s3, %s206
        %p208 = scmp.eq.s32.totalorder %s22, 0
        // Predicated region
        $region37: #{tpu_custom_call.1} parent=31 // pred_check
          %p209 = pneg %p208
        $region38: #{tpu_custom_call.1} parent=31 // pred_check_branch
          %211 = sbr.rel (%p209) target = $region40
        $region39: #{tpu_custom_call.1} parent=31 // pred_region
          %212 = vst [vmem:[#allocation2] sm:$0xff] 0.0
          %213 = vst [vmem:[#allocation2 + $0x8] sm:$0xff] 0.0
          %214 = vst [vmem:[#allocation2 + $0x10] sm:$0xff] 0.0
          %215 = vst [vmem:[#allocation2 + $0x18] sm:$0xff] 0.0
        $region40: #{tpu_custom_call.1} parent=31 // pred_fallthru
          _
        %v216 = vld [vmem:[%s179] sm:$0xff]
        %v217 = vld [vmem:[%s179 + $0x8] sm:$0xff]
        %v218 = vld [vmem:[%s179 + $0x10] sm:$0xff]
        %v219 = vld [vmem:[%s179 + $0x18] sm:$0xff]
        %v220 = vld [vmem:[#allocation2] sm:$0xff]
        %v221 = vld [vmem:[#allocation2 + $0x8] sm:$0xff]
        %v222 = vld [vmem:[#allocation2 + $0x10] sm:$0xff]
        %v223 = vld [vmem:[#allocation2 + $0x18] sm:$0xff]
        %v224 = vadd.f32 %v220, %v216
        %v225 = vadd.f32 %v221, %v217
        %v226 = vadd.f32 %v222, %v218
        %v227 = vadd.f32 %v223, %v219
        %228 = vst [vmem:[#allocation2] sm:$0xff] %v224
        %229 = vst [vmem:[#allocation2 + $0x8] sm:$0xff] %v225
        %230 = vst [vmem:[#allocation2 + $0x10] sm:$0xff] %v226
        %231 = vst [vmem:[#allocation2 + $0x18] sm:$0xff] %v227
        %p232 = scmp.eq.s32.totalorder %s22, 1
        // Predicated region
        $region41: #{tpu_custom_call.1} parent=31 // pred_check
          %p233 = pneg %p232
        $region42: #{tpu_custom_call.1} parent=31 // pred_check_branch
          %235 = sbr.rel (%p233) target = $region44
        $region43: #{tpu_custom_call.1} parent=31 // pred_region
          %v236 = vld [vmem:[#allocation2] sm:$0xff]
          %v237 = vld [vmem:[#allocation2 + $0x8] sm:$0xff]
          %v238 = vld [vmem:[#allocation2 + $0x10] sm:$0xff]
          %v239 = vld [vmem:[#allocation2 + $0x18] sm:$0xff]
          %240 = vadd.xlane.f32.xlu0 %v236
          %v241 = vpop.xlane.xlu0 %240
          %242 = vadd.xlane.f32.xlu0 %v237
          %v243 = vpop.xlane.xlu0 %242
          %244 = vadd.xlane.f32.xlu0 %v238
          %v245 = vpop.xlane.xlu0 %244
          %246 = vadd.xlane.f32.xlu0 %v239
          %v247 = vpop.xlane.xlu0 %246
          %v248 = vmul.f32 %v241, 0.00390625
          %v249 = vmul.f32 %v243, 0.00390625
          %v250 = vmul.f32 %v245, 0.00390625
          %v251 = vmul.f32 %v247, 0.00390625
          %v252 = vld [vmem:[%s1] sm:$0xff]
          %v253 = vld [vmem:[%s1 + $0x8] sm:$0xff]
          %v254 = vld [vmem:[%s1 + $0x10] sm:$0xff]
          %v255 = vld [vmem:[%s1 + $0x18] sm:$0xff]
          %v256 = vmul.f32 %v252, %v248
          %v257 = vmul.f32 %v253, %v249
          %v258 = vmul.f32 %v254, %v250
          %v259 = vmul.f32 %v255, %v251
          %vm260 = vcmask 15360
          %v261 = vsel %vm260, %v256, 0.0
          %v262 = vsel %vm260, %v257, 0.0
          %v263 = vadd.f32 %v261, %v262
          %v264 = vsel %vm260, %v258, 0.0
          %v265 = vadd.f32 %v263, %v264
          %v266 = vsel %vm260, %v259, 0.0
          %v267 = vadd.f32 %v265, %v266
          %v268 = vrot.slane %v267, 4
          %v269 = vadd.f32 %v267, %v268
          %v270 = vrot.slane %v269, 2
          %v271 = vadd.f32 %v269, %v270
          %v272 = vrot.slane %v271, 1
          %v273 = vadd.f32 %v271, %v272
          %v274 = vmax.f32 %v273, 0.0
          %v275 = vld [vmem:[%s2] sm:$0xff]
          %v276 = vld [vmem:[%s2 + $0x8] sm:$0xff]
          %v277 = vld [vmem:[%s2 + $0x10] sm:$0xff]
          %v278 = vld [vmem:[%s2 + $0x18] sm:$0xff]
          %v279 = vmul.f32 %v275, %v274
          %v280 = vmul.f32 %v276, %v274
          %v281 = vmul.f32 %v277, %v274
          %v282 = vmul.f32 %v278, %v274
          %v283 = vsel %vm260, %v279, 0.0
          %284 = vadd.xlane.f32.xlu0 %v283
          %v285 = vpop.xlane.xlu0 %284
          %v286 = vsel %vm260, %v280, 0.0
          %287 = vadd.xlane.f32.xlu0 %v286
          %v288 = vpop.xlane.xlu0 %287
          %v289 = vsel %vm260, %v281, 0.0
          %290 = vadd.xlane.f32.xlu0 %v289
          %v291 = vpop.xlane.xlu0 %290
          %v292 = vsel %vm260, %v282, 0.0
          %293 = vadd.xlane.f32.xlu0 %v292
          %v294 = vpop.xlane.xlu0 %293
          %v295 = vxor.u32 %v285, 2147483648
          %v296 = vxor.u32 %v288, 2147483648
          %v297 = vxor.u32 %v291, 2147483648
          %v298 = vxor.u32 %v294, 2147483648
          %v299 = vmul.f32 %v295, 1.442695
          %v300 = vpow.pop %v299
          %v301 = vmul.f32 %v296, 1.442695
          %v302 = vpow.pop %v301
          %v303 = vmul.f32 %v297, 1.442695
          %v304 = vpow.pop %v303
          %v305 = vmul.f32 %v298, 1.442695
          %v306 = vpow.pop %v305
          %v307 = vadd.f32 %v300, 1.0
          %v308 = vadd.f32 %v302, 1.0
          %v309 = vadd.f32 %v304, 1.0
          %v310 = vadd.f32 %v306, 1.0
          %v311 = vrcp.pop %v307
          %v312 = vmul.f32 %v307, %v311
          %v313 = vsub.f32 1.0, %v312
          %v314 = vmul.f32 %v311, %v313
          %v315 = vadd.f32 %v311, %v314
          %vm316 = vweird.f32 %v307
          %vm317 = vweird.f32 %v311
          %vm318 = vmor %vm316, %vm317
          %v319 = vsel %vm318, %v311, %v315
          %v320 = vand.u32 2147483647, %v307
          %vm321 = vcmp.eq.f32.partialorder %v320, 8.507059e+37
          %v322 = vand.u32 %v307, 2147483648
          %v323 = vor.u32 1.1754944e-38, %v322
          %v324 = vsel %vm321, %v323, %v319
          %v325 = vmul.f32 1.0, %v324
          %v326 = vrcp.pop %v308
          %v327 = vmul.f32 %v308, %v326
          %v328 = vsub.f32 1.0, %v327
          %v329 = vmul.f32 %v326, %v328
          %v330 = vadd.f32 %v326, %v329
          %vm331 = vweird.f32 %v308
          %vm332 = vweird.f32 %v326
          %vm333 = vmor %vm331, %vm332
          %v334 = vsel %vm333, %v326, %v330
          %v335 = vand.u32 2147483647, %v308
          %vm336 = vcmp.eq.f32.partialorder %v335, 8.507059e+37
          %v337 = vand.u32 %v308, 2147483648
          %v338 = vor.u32 1.1754944e-38, %v337
          %v339 = vsel %vm336, %v338, %v334
          %v340 = vmul.f32 1.0, %v339
          %v341 = vrcp.pop %v309
          %v342 = vmul.f32 %v309, %v341
          %v343 = vsub.f32 1.0, %v342
          %v344 = vmul.f32 %v341, %v343
          %v345 = vadd.f32 %v341, %v344
          %vm346 = vweird.f32 %v309
          %vm347 = vweird.f32 %v341
          %vm348 = vmor %vm346, %vm347
          %v349 = vsel %vm348, %v341, %v345
          %v350 = vand.u32 2147483647, %v309
          %vm351 = vcmp.eq.f32.partialorder %v350, 8.507059e+37
          %v352 = vand.u32 %v309, 2147483648
          %v353 = vor.u32 1.1754944e-38, %v352
          %v354 = vsel %vm351, %v353, %v349
          %v355 = vmul.f32 1.0, %v354
          %v356 = vrcp.pop %v310
          %v357 = vmul.f32 %v310, %v356
          %v358 = vsub.f32 1.0, %v357
          %v359 = vmul.f32 %v356, %v358
          %v360 = vadd.f32 %v356, %v359
          %vm361 = vweird.f32 %v310
          %vm362 = vweird.f32 %v356
          %vm363 = vmor %vm361, %vm362
          %v364 = vsel %vm363, %v356, %v360
          %v365 = vand.u32 2147483647, %v310
          %vm366 = vcmp.eq.f32.partialorder %v365, 8.507059e+37
          %v367 = vand.u32 %v310, 2147483648
          %v368 = vor.u32 1.1754944e-38, %v367
          %v369 = vsel %vm366, %v368, %v364
          %v370 = vmul.f32 1.0, %v369
          %vm371 = vcmask 7168
          %372 = vst.msk [vmem:[%s207] sm:$0xff] %vm371, %v325
          %373 = vst.msk [vmem:[%s207 + $0x8] sm:$0xff] %vm371, %v340
          %374 = vst.msk [vmem:[%s207 + $0x10] sm:$0xff] %vm371, %v355
          %375 = vst.msk [vmem:[%s207 + $0x18] sm:$0xff] %vm371, %v370
        $region44: #{tpu_custom_call.1} parent=31 // pred_fallthru
          _
        %p376 = scmp.lt.s32.totalorder %s21, 1
        %s377 = scalar_select %p376, %s21, 1
        %s378 = smul.addr %s377, 4
        %s379 = smul.addr %s378, 8
        %s380 = scalar_lea.vmem %s3, %s379
        // Predicated region
        $region45: #{tpu_custom_call.1} parent=31 // pred_check
          %p381 = pneg %p117
        $region46: #{tpu_custom_call.1} parent=31 // pred_check_branch
          %383 = sbr.rel (%p381) target = $region48
        $region47: #{tpu_custom_call.1} parent=31 // pred_region
          _
        $region48: #{tpu_custom_call.1} parent=31 // pred_fallthru
          _
      $region32: #{tpu_custom_call.1} parent=5 // pred_fallthru
        _
      %p384 = scmp.le.s32.totalorder 2, %s12
      // Predicated region
      $region49: #{tpu_custom_call.1} parent=5 // pred_check
        %p385 = pneg %p384
      $region50: #{tpu_custom_call.1} parent=5 // pred_check_branch
        %387 = sbr.rel (%p385) target = $region52
      $region51: #{tpu_custom_call.1} parent=5 // pred_region
        %s388 = ssub.s32 %s12, 2
        // Predicated region
        $region53: #{tpu_custom_call.1} parent=51 // pred_check
          %p389 = pneg %p123
        $region54: #{tpu_custom_call.1} parent=51 // pred_check_branch
          %391 = sbr.rel (%p389) target = $region56
        $region55: #{tpu_custom_call.1} parent=51 // pred_region
          %p392 = scmp.lt.s32.totalorder %s23, 1
          %s393 = scalar_select %p392, %s23, 1
          %s394 = smul.addr %s393, 4
          %s395 = smul.addr %s394, 8
          %s396 = scalar_lea.vmem %s3, %s395
        $region56: #{tpu_custom_call.1} parent=51 // pred_fallthru
          _
      $region52: #{tpu_custom_call.1} parent=5 // pred_fallthru
        _
    $region6: #{tpu_custom_call.1} parent=1 // loop_footer
      %s16 = sadd.s32 1, %s12
    $region7: #{tpu_custom_call.1} parent=1 // loop_footer_branch
      %11 = sbr.rel target = $region3
    $region8: #{tpu_custom_call.1} parent=1 // loop_exit
      _
    %397 = vsyncpa [#allocation4], 1
    %s398 = scalar_lea.sflag [#allocation4], 1
    %399 = vsyncpa %s398, 1

</llo_original>
